<compile_context>
chip_gen: v5e
topology: v5e:2x2
jax: 0.10.0
libtpu: 0.0.40
codegen_flags: <defaults>
</compile_context>

<pallas_src>
import jax
import jax.numpy as jnp
from jax.experimental import pallas as pl
from jax.experimental.pallas import tpu as pltpu

_IN, _HID, _OUT = 784, 256, 10
_TB_MAX = 512      # per-step batch tile upper bound (~85% of HBM roofline)


def _mlp_kernel(x_ref, w1_ref, b1_ref, w2_ref, b2_ref, o_ref):
    # Layer 1: bf16 x bf16 MXU matmul with f32 accumulation.
    h = jnp.dot(x_ref[...], w1_ref[...], preferred_element_type=jnp.float32)
    h = h + b1_ref[...]
    # sigmoid(h) == 0.5 * (tanh(0.5 * h) + 1): one EUP transcendental, no divide.
    h = 0.5 * (jnp.tanh(0.5 * h) + 1.0)

    # Layer 2: (TB, 256) x (256, 10) -> narrow logits block.
    logits = jnp.dot(h.astype(jnp.bfloat16), w2_ref[...],
                     preferred_element_type=jnp.float32)
    logits = logits + b2_ref[...]

    # Numerically stable softmax over the 10 classes (all math stays in f32).
    m = jnp.max(logits, axis=-1, keepdims=True)
    e = jnp.exp(logits - m)
    denom = jnp.sum(e, axis=-1, keepdims=True)
    o_ref[...] = (e * pl.reciprocal(denom)).astype(o_ref.dtype)


def _round_up(x, m):
    return (x + m - 1) // m * m


def _choose_tb(B):
    """Batch tile: multiple of 8, <= _TB_MAX, minimal ragged waste, and an
    even/balanced tile count once there is enough work for 2 TensorCores."""
    n = max(1, -(-B // _TB_MAX))
    if B >= 2 * 256:                      # enough rows to keep both v7x TCs busy
        n = _round_up(max(n, 2), 2)       # even tile count -> balanced split
    return _round_up(-(-B // n), 8)


@jax.jit
def network_forward(x, w1, b1, w2, b2):
    """Forward pass of Network.

    x:  (B, 784) bfloat16 (activations arrive pre-cast / fused upstream)
    w1: (784, 256) bfloat16, b1: (1, 256) float32
    w2: (256, 10)  bfloat16, b2: (1, 10)  float32
    returns: (B, 10) float32 probabilities (rows sum to 1).
    """
    B = x.shape[0]
    TB = _choose_tb(B)
    grid = (pl.cdiv(B, TB),)              # ragged last tile handled by Pallas masking

    cost = pl.CostEstimate(
        flops=2 * B * _IN * _HID + 2 * B * _HID * _OUT,
        transcendentals=B * (_HID + _OUT),
        bytes_accessed=(B * _IN * 2 + _IN * _HID * 2 + _HID * 4
                        + _HID * _OUT * 2 + _OUT * 4 + B * _OUT * 4),
    )

    return pl.pallas_call(
        _mlp_kernel,
        out_shape=jax.ShapeDtypeStruct((B, _OUT), jnp.float32),
        grid=grid,
        in_specs=[
            pl.BlockSpec((TB, _IN), lambda i: (i, 0)),        # x: tiled on batch
            pl.BlockSpec((_IN, _HID), lambda i: (0, 0)),      # W1: VMEM-resident
            pl.BlockSpec((1, _HID), lambda i: (0, 0)),        # b1: VMEM-resident
            pl.BlockSpec((_HID, _OUT), lambda i: (0, 0)),     # W2: VMEM-resident
            pl.BlockSpec((1, _OUT), lambda i: (0, 0)),        # b2: VMEM-resident
        ],
        out_specs=pl.BlockSpec((TB, _OUT), lambda i: (i, 0)), # direct (TB,10) store
        compiler_params=pltpu.CompilerParams(
            dimension_semantics=("parallel",)),
        cost_estimate=cost,
    )(x, w1, b1, w2, b2)


def init_params(key):
    """nn.Linear default init (uniform +/- 1/sqrt(fan_in)); weights pre-transposed
    to (in, out) and stored in bf16, biases kept in f32."""
    k1, k2, k3, k4 = jax.random.split(key, 4)
    bound1 = 1.0 / jnp.sqrt(float(_IN))
    bound2 = 1.0 / jnp.sqrt(float(_HID))
    w1 = jax.random.uniform(k1, (_IN, _HID), jnp.float32, -bound1, bound1)
    b1 = jax.random.uniform(k2, (1, _HID), jnp.float32, -bound1, bound1)
    w2 = jax.random.uniform(k3, (_HID, _OUT), jnp.float32, -bound2, bound2)
    b2 = jax.random.uniform(k4, (1, _OUT), jnp.float32, -bound2, bound2)
    return w1.astype(jnp.bfloat16), b1, w2.astype(jnp.bfloat16), b2


def reference_forward(x, w1, b1, w2, b2):
    """Plain-JAX reference mirroring the kernel's bf16-operand / f32-accum math."""
    h = jnp.dot(x, w1, preferred_element_type=jnp.float32) + b1
    h = jax.nn.sigmoid(h)
    logits = jnp.dot(h.astype(jnp.bfloat16), w2,
                     preferred_element_type=jnp.float32) + b2
    return jax.nn.softmax(logits, axis=1)


if __name__ == "__main__":
    key = jax.random.PRNGKey(0)
    kx, kp = jax.random.split(key)
    w1, b1, w2, b2 = init_params(kp)

    # Small demo batch (single grid step).
    batch = 8
    x = jax.random.normal(kx, (batch, _IN), jnp.float32).astype(jnp.bfloat16)
    out = jax.block_until_ready(network_forward(x, w1, b1, w2, b2))
    ref = reference_forward(x, w1, b1, w2, b2)
    assert out.shape == (batch, _OUT)
    assert bool(jnp.all(jnp.isfinite(out)))
    assert jnp.allclose(out, ref, atol=5e-3, rtol=0)
    assert jnp.allclose(jnp.sum(out, axis=1), 1.0, atol=1e-3)

    # Larger, non-tile-aligned batch: 2 balanced tiles of 304 rows each,
    # ragged last tile masked automatically (no padding copy anywhere).
    batch2 = 600
    x2 = jax.random.normal(jax.random.PRNGKey(1), (batch2, _IN),
                           jnp.float32).astype(jnp.bfloat16)
    out2 = jax.block_until_ready(network_forward(x2, w1, b1, w2, b2))
    ref2 = reference_forward(x2, w1, b1, w2, b2)
    assert out2.shape == (batch2, _OUT)
    assert bool(jnp.all(jnp.isfinite(out2)))
    assert jnp.allclose(out2, ref2, atol=5e-3, rtol=0)
    assert jnp.allclose(jnp.sum(out2, axis=1), 1.0, atol=1e-3)

    print("KERNEL_OK")
</pallas_src>

<mosaic_0001>
module attributes {stable_mosaic.version = 11 : i64} {
  func.func @_mlp_kernel(%arg0: i32, %arg1: memref<8x784xbf16, #tpu.memory_space<vmem>>, %arg2: memref<784x256xbf16, #tpu.memory_space<vmem>>, %arg3: memref<1x256xf32, #tpu.memory_space<vmem>>, %arg4: memref<256x10xbf16, #tpu.memory_space<vmem>>, %arg5: memref<1x10xf32, #tpu.memory_space<vmem>>, %arg6: memref<8x10xf32, #tpu.memory_space<vmem>>) attributes {dimension_semantics = [#tpu.dimension_semantics<parallel>], iteration_bounds = array<i64: 1>, scalar_prefetch = 0 : i64, scratch_operands = 0 : i64, tpu.core_type = #tpu.core_type<tc>, window_params = [{transform_indices = @transform_0, window_bounds = array<i64: 8, 784>}, {pipeline_mode = #tpu.pipeline_mode<synchronous>, transform_indices = @transform_1, window_bounds = array<i64: 784, 256>}, {pipeline_mode = #tpu.pipeline_mode<synchronous>, transform_indices = @transform_2, window_bounds = array<i64: 1, 256>}, {pipeline_mode = #tpu.pipeline_mode<synchronous>, transform_indices = @transform_3, window_bounds = array<i64: 256, 10>}, {pipeline_mode = #tpu.pipeline_mode<synchronous>, transform_indices = @transform_4, window_bounds = array<i64: 1, 10>}, {transform_indices = @transform_5, window_bounds = array<i64: 8, 10>}]} {
    %c0 = arith.constant 0 : index
    %c0_0 = arith.constant 0 : index
    %0 = vector.load %arg1[%c0, %c0_0] : memref<8x784xbf16, #tpu.memory_space<vmem>>, vector<8x784xbf16>
    %c0_1 = arith.constant 0 : index
    %c0_2 = arith.constant 0 : index
    %1 = vector.load %arg2[%c0_1, %c0_2] : memref<784x256xbf16, #tpu.memory_space<vmem>>, vector<784x256xbf16>
    %cst = arith.constant dense<0.000000e+00> : vector<8x256xf32>
    %2 = tpu.matmul %0, %1, %cst {dimension_numbers = #tpu.dot_dimension_numbers<[1], [0], [0], [1], [0, 0, 1, 1], [], []>} : vector<8x784xbf16>, vector<784x256xbf16>, vector<8x256xf32> -> vector<8x256xf32>
    %c0_3 = arith.constant 0 : index
    %c0_4 = arith.constant 0 : index
    %3 = vector.load %arg3[%c0_3, %c0_4] : memref<1x256xf32, #tpu.memory_space<vmem>>, vector<1x256xf32>
    %4 = vector.broadcast %3 : vector<1x256xf32> to vector<8x256xf32>
    %5 = arith.addf %2, %4 : vector<8x256xf32>
    %cst_5 = arith.constant 5.000000e-01 : f32
    %6 = vector.broadcast %cst_5 : f32 to vector<8x256xf32>
    %7 = arith.mulf %6, %5 : vector<8x256xf32>
    %8 = math.tanh %7 : vector<8x256xf32>
    %cst_6 = arith.constant 1.000000e+00 : f32
    %9 = vector.broadcast %cst_6 : f32 to vector<8x256xf32>
    %10 = arith.addf %8, %9 : vector<8x256xf32>
    %cst_7 = arith.constant 5.000000e-01 : f32
    %11 = vector.broadcast %cst_7 : f32 to vector<8x256xf32>
    %12 = arith.mulf %11, %10 : vector<8x256xf32>
    %13 = arith.truncf %12 : vector<8x256xf32> to vector<8x256xbf16>
    %c0_8 = arith.constant 0 : index
    %c0_9 = arith.constant 0 : index
    %14 = vector.load %arg4[%c0_8, %c0_9] : memref<256x10xbf16, #tpu.memory_space<vmem>>, vector<256x10xbf16>
    %cst_10 = arith.constant dense<0.000000e+00> : vector<8x10xf32>
    %15 = tpu.matmul %13, %14, %cst_10 {dimension_numbers = #tpu.dot_dimension_numbers<[1], [0], [0], [1], [0, 0, 1, 1], [], []>} : vector<8x256xbf16>, vector<256x10xbf16>, vector<8x10xf32> -> vector<8x10xf32>
    %c0_11 = arith.constant 0 : index
    %c0_12 = arith.constant 0 : index
    %16 = vector.load %arg5[%c0_11, %c0_12] : memref<1x10xf32, #tpu.memory_space<vmem>>, vector<1x10xf32>
    %17 = vector.broadcast %16 : vector<1x10xf32> to vector<8x10xf32>
    %18 = arith.addf %15, %17 : vector<8x10xf32>
    %cst_13 = arith.constant dense<0xFF800000> : vector<8xf32>
    %19 = vector.multi_reduction <maximumf>, %18, %cst_13 [1] : vector<8x10xf32> to vector<8xf32>
    %20 = vector.shape_cast %19 : vector<8xf32> to vector<8x1xf32>
    %21 = vector.broadcast %20 : vector<8x1xf32> to vector<8x10xf32>
    %22 = arith.subf %18, %21 : vector<8x10xf32>
    %23 = math.exp %22 : vector<8x10xf32>
    %cst_14 = arith.constant dense<0.000000e+00> : vector<8xf32>
    %24 = vector.multi_reduction <add>, %23, %cst_14 [1] : vector<8x10xf32> to vector<8xf32>
    %25 = vector.shape_cast %24 : vector<8xf32> to vector<8x1xf32>
    %26 = tpu.reciprocal %25 : vector<8x1xf32> -> vector<8x1xf32>
    %27 = vector.broadcast %26 : vector<8x1xf32> to vector<8x10xf32>
    %28 = arith.mulf %23, %27 : vector<8x10xf32>
    %c0_15 = arith.constant 0 : index
    %c0_16 = arith.constant 0 : index
    %29 = vector.load %arg6[%c0_15, %c0_16] : memref<8x10xf32, #tpu.memory_space<vmem>>, vector<8x10xf32>
    tpu.vector_store %arg6[%c0_15, %c0_16], %28 {strides = array<i32>} : memref<8x10xf32, #tpu.memory_space<vmem>>, vector<8x10xf32>,
    return
  }
  func.func @transform_0(%arg0: i32) -> (i32, i32) {
    %c0_i32 = arith.constant 0 : i32
    %c0_i32_0 = arith.constant 0 : i32
    return %arg0, %c0_i32 : i32, i32
  }
  func.func @transform_1(%arg0: i32) -> (i32, i32) {
    %c0_i32 = arith.constant 0 : i32
    %c0_i32_0 = arith.constant 0 : i32
    %c0_i32_1 = arith.constant 0 : i32
    return %c0_i32, %c0_i32_0 : i32, i32
  }
  func.func @transform_2(%arg0: i32) -> (i32, i32) {
    %c0_i32 = arith.constant 0 : i32
    %c0_i32_0 = arith.constant 0 : i32
    %c0_i32_1 = arith.constant 0 : i32
    return %c0_i32, %c0_i32_0 : i32, i32
  }
  func.func @transform_3(%arg0: i32) -> (i32, i32) {
    %c0_i32 = arith.constant 0 : i32
    %c0_i32_0 = arith.constant 0 : i32
    %c0_i32_1 = arith.constant 0 : i32
    return %c0_i32, %c0_i32_0 : i32, i32
  }
  func.func @transform_4(%arg0: i32) -> (i32, i32) {
    %c0_i32 = arith.constant 0 : i32
    %c0_i32_0 = arith.constant 0 : i32
    %c0_i32_1 = arith.constant 0 : i32
    return %c0_i32, %c0_i32_0 : i32, i32
  }
  func.func @transform_5(%arg0: i32) -> (i32, i32) {
    %c0_i32 = arith.constant 0 : i32
    %c0_i32_0 = arith.constant 0 : i32
    return %arg0, %c0_i32 : i32, i32
  }
}

</mosaic_0001>

<llo_original>
// kernel: network_forward.1
$region0: #{network_forward.1}
  #allocation0 [shape = 'u32[]', space=smem, size = 0x4, offset = 0x4, fixed_abs, tag = 'smem constant byte address 0x4 - core index']
  #allocation1 [shape = 'u32[72,128]{1,0:T(1,128)}', space=vmem, size = 0x9000, scoped, tag = 'internal scratch']
  %s0 = inlined_call_operand.vmem [shape: bf16[8,784], index: 0, kind: input, shape index: {}]
  %s1 = inlined_call_operand.hbm [shape: bf16[784,256], index: 1, kind: input, shape index: {}]
  %s2 = inlined_call_operand.vmem [shape: f32[1,256], index: 2, kind: input, shape index: {}]
  %s3 = inlined_call_operand.vmem [shape: bf16[256,10], index: 3, kind: input, shape index: {}]
  %s4 = inlined_call_operand.vmem [shape: f32[1,10], index: 4, kind: input, shape index: {}]
  %s5 = inlined_call_operand.hbm [shape: f32[8,10], index: 5, kind: output, shape index: {}]
  %s6 = sld [smem:[#allocation0]]
  $region34: #{network_forward.1} parent=0
    _
  %s8 = ssub.s32 1, %s6
  %s9 = scalar_select 0, %s8, %s6
  $region1: #{network_forward.1} parent=0
    #allocation2 [shape = 'u8[401408]{0}', space=vmem, size = 0x62000, scoped, tag = 'input window, operand 1, single buffered']
    #allocation3 [shape = 's32[1]{0}', space=sflag, size = 0x4, scoped, tag = 'scoped memory for network_forward.1']
    #allocation4 [shape = 's32[1]{0}', space=sflag, size = 0x4, scoped, tag = 'scoped memory for network_forward.1']
    #allocation5 [shape = 'u8[4096]{0}', space=vmem, size = 0x1000, scoped, tag = 'output window, operand 0, single buffered']
    %10 = vsyncpa [#allocation3], 0
    %11 = vsyncpa [#allocation4], 0
    // Predicated region
    $region2: #{network_forward.1} parent=1 // pred_check
      _
    $region3: #{network_forward.1} parent=1 // pred_check_branch
      %13 = sbr.rel (0) target = $region5
    $region4: #{network_forward.1} parent=1 // pred_region
      _
    $region5: #{network_forward.1} parent=1 // pred_fallthru
      _
    // Predicated region
    $region6: #{network_forward.1} parent=1 // pred_check
      _
    $region7: #{network_forward.1} parent=1 // pred_check_branch
      %15 = sbr.rel (0) target = $region9
    $region8: #{network_forward.1} parent=1 // pred_region
      %17 = vsyncadd [#allocation3], 0
      %s18 = sshll.u32 %s1, 4
      %s19 = int_to_ptr.hbm [resolvable:$true] %s18
      %s20 = sshll.u32 [#allocation2], 4
      %s21 = int_to_ptr.vmem [resolvable:$true] %s20
      %26 = dma.hbm_to_vmem [thread:$0]  %s19, 12544, %s21, [#allocation3], 128, 128, 8
    $region9: #{network_forward.1} parent=1 // pred_fallthru
      _
    // Predicated region
    $region10: #{network_forward.1} parent=1 // pred_check
      _
    $region11: #{network_forward.1} parent=1 // pred_check_branch
      %28 = sbr.rel (0) target = $region13
    $region12: #{network_forward.1} parent=1 // pred_region
      _
    $region13: #{network_forward.1} parent=1 // pred_fallthru
      _
    // Predicated region
    $region14: #{network_forward.1} parent=1 // pred_check
      _
    $region15: #{network_forward.1} parent=1 // pred_check_branch
      %30 = sbr.rel (0) target = $region17
    $region16: #{network_forward.1} parent=1 // pred_region
      _
    $region17: #{network_forward.1} parent=1 // pred_fallthru
      _
    // Predicated region
    $region18: #{network_forward.1} parent=1 // pred_check
      _
    $region19: #{network_forward.1} parent=1 // pred_check_branch
      %32 = sbr.rel (0) target = $region21
    $region20: #{network_forward.1} parent=1 // pred_region
      _
    $region21: #{network_forward.1} parent=1 // pred_fallthru
      _
    // Predicated region
    $region22: #{network_forward.1} parent=1 // pred_check
      _
    $region23: #{network_forward.1} parent=1 // pred_check_branch
      %34 = sbr.rel (0) target = $region25
    $region24: #{network_forward.1} parent=1 // pred_region
      %36 = dma.done [#allocation3], 12544
    $region25: #{network_forward.1} parent=1 // pred_fallthru
      _
    %v38 = vld [vmem:[%s0] sm:$0xff]
    %v39 = vld [vmem:[%s0 + $0x8] sm:$0xff]
    %v40 = vld [vmem:[%s0 + $0x10] sm:$0xff]
    %v41 = vld [vmem:[%s0 + $0x18] sm:$0xf]
    %v42 = vld [vmem:[#allocation2] sm:$0xff]
    %v43 = vld [vmem:[#allocation2 + $0x8] sm:$0xff]
    %v44 = vld [vmem:[#allocation2 + $0x10] sm:$0xff]
    %v45 = vld [vmem:[#allocation2 + $0x18] sm:$0xff]
    %v46 = vld [vmem:[#allocation2 + $0x20] sm:$0xff]
    %v47 = vld [vmem:[#allocation2 + $0x28] sm:$0xff]
    %v48 = vld [vmem:[#allocation2 + $0x30] sm:$0xff]
    %v49 = vld [vmem:[#allocation2 + $0x38] sm:$0xff]
    %v50 = vld [vmem:[#allocation2 + $0x40] sm:$0xff]
    %v51 = vld [vmem:[#allocation2 + $0x48] sm:$0xff]
    %v52 = vld [vmem:[#allocation2 + $0x50] sm:$0xff]
    %v53 = vld [vmem:[#allocation2 + $0x58] sm:$0xff]
    %v54 = vld [vmem:[#allocation2 + $0x60] sm:$0xff]
    %v55 = vld [vmem:[#allocation2 + $0x68] sm:$0xff]
    %v56 = vld [vmem:[#allocation2 + $0x70] sm:$0xff]
    %v57 = vld [vmem:[#allocation2 + $0x78] sm:$0xff]
    %v58 = vld [vmem:[#allocation2 + $0x80] sm:$0xff]
    %v59 = vld [vmem:[#allocation2 + $0x88] sm:$0xff]
    %v60 = vld [vmem:[#allocation2 + $0x90] sm:$0xff]
    %v61 = vld [vmem:[#allocation2 + $0x98] sm:$0xff]
    %v62 = vld [vmem:[#allocation2 + $0xa0] sm:$0xff]
    %v63 = vld [vmem:[#allocation2 + $0xa8] sm:$0xff]
    %v64 = vld [vmem:[#allocation2 + $0xb0] sm:$0xff]
    %v65 = vld [vmem:[#allocation2 + $0xb8] sm:$0xff]
    %v66 = vld [vmem:[#allocation2 + $0xc0] sm:$0xff]
    %v67 = vld [vmem:[#allocation2 + $0xc8] sm:$0xff]
    %v68 = vld [vmem:[#allocation2 + $0xd0] sm:$0xff]
    %v69 = vld [vmem:[#allocation2 + $0xd8] sm:$0xff]
    %v70 = vld [vmem:[#allocation2 + $0xe0] sm:$0xff]
    %v71 = vld [vmem:[#allocation2 + $0xe8] sm:$0xff]
    %v72 = vld [vmem:[#allocation2 + $0xf0] sm:$0xff]
    %v73 = vld [vmem:[#allocation2 + $0xf8] sm:$0xff]
    %v74 = vld [vmem:[#allocation2 + $0x100] sm:$0xff]
    %v75 = vld [vmem:[#allocation2 + $0x108] sm:$0xff]
    %v76 = vld [vmem:[#allocation2 + $0x110] sm:$0xff]
    %v77 = vld [vmem:[#allocation2 + $0x118] sm:$0xff]
    %v78 = vld [vmem:[#allocation2 + $0x120] sm:$0xff]
    %v79 = vld [vmem:[#allocation2 + $0x128] sm:$0xff]
    %v80 = vld [vmem:[#allocation2 + $0x130] sm:$0xff]
    %v81 = vld [vmem:[#allocation2 + $0x138] sm:$0xff]
    %v82 = vld [vmem:[#allocation2 + $0x140] sm:$0xff]
    %v83 = vld [vmem:[#allocation2 + $0x148] sm:$0xff]
    %v84 = vld [vmem:[#allocation2 + $0x150] sm:$0xff]
    %v85 = vld [vmem:[#allocation2 + $0x158] sm:$0xff]
    %v86 = vld [vmem:[#allocation2 + $0x160] sm:$0xff]
    %v87 = vld [vmem:[#allocation2 + $0x168] sm:$0xff]
    %v88 = vld [vmem:[#allocation2 + $0x170] sm:$0xff]
    %v89 = vld [vmem:[#allocation2 + $0x178] sm:$0xff]
    %v90 = vld [vmem:[#allocation2 + $0x180] sm:$0xff]
    %v91 = vld [vmem:[#allocation2 + $0x188] sm:$0xff]
    %v92 = vld [vmem:[#allocation2 + $0x190] sm:$0xff]
    %v93 = vld [vmem:[#allocation2 + $0x198] sm:$0xff]
    %v94 = vld [vmem:[#allocation2 + $0x1a0] sm:$0xff]
    %v95 = vld [vmem:[#allocation2 + $0x1a8] sm:$0xff]
    %v96 = vld [vmem:[#allocation2 + $0x1b0] sm:$0xff]
    %v97 = vld [vmem:[#allocation2 + $0x1b8] sm:$0xff]
    %v98 = vld [vmem:[#allocation2 + $0x1c0] sm:$0xff]
    %v99 = vld [vmem:[#allocation2 + $0x1c8] sm:$0xff]
    %v100 = vld [vmem:[#allocation2 + $0x1d0] sm:$0xff]
    %v101 = vld [vmem:[#allocation2 + $0x1d8] sm:$0xff]
    %v102 = vld [vmem:[#allocation2 + $0x1e0] sm:$0xff]
    %v103 = vld [vmem:[#allocation2 + $0x1e8] sm:$0xff]
    %v104 = vld [vmem:[#allocation2 + $0x1f0] sm:$0xff]
    %v105 = vld [vmem:[#allocation2 + $0x1f8] sm:$0xff]
    %v106 = vld [vmem:[#allocation2 + $0x200] sm:$0xff]
    %v107 = vld [vmem:[#allocation2 + $0x208] sm:$0xff]
    %v108 = vld [vmem:[#allocation2 + $0x210] sm:$0xff]
    %v109 = vld [vmem:[#allocation2 + $0x218] sm:$0xff]
    %v110 = vld [vmem:[#allocation2 + $0x220] sm:$0xff]
    %v111 = vld [vmem:[#allocation2 + $0x228] sm:$0xff]
    %v112 = vld [vmem:[#allocation2 + $0x230] sm:$0xff]
    %v113 = vld [vmem:[#allocation2 + $0x238] sm:$0xff]
    %v114 = vld [vmem:[#allocation2 + $0x240] sm:$0xff]
    %v115 = vld [vmem:[#allocation2 + $0x248] sm:$0xff]
    %v116 = vld [vmem:[#allocation2 + $0x250] sm:$0xff]
    %v117 = vld [vmem:[#allocation2 + $0x258] sm:$0xff]
    %v118 = vld [vmem:[#allocation2 + $0x260] sm:$0xff]
    %v119 = vld [vmem:[#allocation2 + $0x268] sm:$0xff]
    %v120 = vld [vmem:[#allocation2 + $0x270] sm:$0xff]
    %v121 = vld [vmem:[#allocation2 + $0x278] sm:$0xff]
    %v122 = vld [vmem:[#allocation2 + $0x280] sm:$0xff]
    %v123 = vld [vmem:[#allocation2 + $0x288] sm:$0xff]
    %v124 = vld [vmem:[#allocation2 + $0x290] sm:$0xff]
    %v125 = vld [vmem:[#allocation2 + $0x298] sm:$0xff]
    %v126 = vld [vmem:[#allocation2 + $0x2a0] sm:$0xff]
    %v127 = vld [vmem:[#allocation2 + $0x2a8] sm:$0xff]
    %v128 = vld [vmem:[#allocation2 + $0x2b0] sm:$0xff]
    %v129 = vld [vmem:[#allocation2 + $0x2b8] sm:$0xff]
    %v130 = vld [vmem:[#allocation2 + $0x2c0] sm:$0xff]
    %v131 = vld [vmem:[#allocation2 + $0x2c8] sm:$0xff]
    %v132 = vld [vmem:[#allocation2 + $0x2d0] sm:$0xff]
    %v133 = vld [vmem:[#allocation2 + $0x2d8] sm:$0xff]
    %v134 = vld [vmem:[#allocation2 + $0x2e0] sm:$0xff]
    %v135 = vld [vmem:[#allocation2 + $0x2e8] sm:$0xff]
    %v136 = vld [vmem:[#allocation2 + $0x2f0] sm:$0xff]
    %v137 = vld [vmem:[#allocation2 + $0x2f8] sm:$0xff]
    %v138 = vld [vmem:[#allocation2 + $0x300] sm:$0xff]
    %v139 = vld [vmem:[#allocation2 + $0x308] sm:$0xff]
    %v140 = vld [vmem:[%s2] sm:$0x3]
    %v142 = vperm.slane %v140, 0
    %v143 = vperm.slane %v140, 1
    %v150 = vunpack.c.l.b16 %v38
    %v151 = vunpack.c.h.b16 %v38
    %v152 = vunpack.c.l.b16 %v39
    %v153 = vunpack.c.h.b16 %v39
    %v154 = vunpack.c.l.b16 %v40
    %v155 = vunpack.c.h.b16 %v40
    %v156 = vunpack.c.l.b16 %v41
    %v157 = vpack.c.b16 %v150, %v150
    %v158 = vpack.c.b16 %v151, %v151
    %v159 = vpack.c.b16 %v152, %v152
    %v160 = vpack.c.b16 %v153, %v153
    %v161 = vpack.c.b16 %v154, %v154
    %v162 = vpack.c.b16 %v155, %v155
    %v163 = vpack.c.b16 %v156, %v156
    %v268 = vunpack.c.l.b16 %v42
    %v269 = vunpack.c.h.b16 %v42
    %v270 = vunpack.c.l.b16 %v43
    %v271 = vunpack.c.h.b16 %v43
    %v272 = vunpack.c.l.b16 %v44
    %v273 = vunpack.c.h.b16 %v44
    %v274 = vunpack.c.l.b16 %v45
    %v275 = vunpack.c.h.b16 %v45
    %v276 = vunpack.c.l.b16 %v46
    %v277 = vunpack.c.h.b16 %v46
    %v278 = vunpack.c.l.b16 %v47
    %v279 = vunpack.c.h.b16 %v47
    %v280 = vunpack.c.l.b16 %v48
    %v281 = vunpack.c.h.b16 %v48
    %v282 = vunpack.c.l.b16 %v49
    %v283 = vunpack.c.h.b16 %v49
    %v284 = vunpack.c.l.b16 %v50
    %v285 = vunpack.c.h.b16 %v50
    %v286 = vunpack.c.l.b16 %v51
    %v287 = vunpack.c.h.b16 %v51
    %v288 = vunpack.c.l.b16 %v52
    %v289 = vunpack.c.h.b16 %v52
    %v290 = vunpack.c.l.b16 %v53
    %v291 = vunpack.c.h.b16 %v53
    %v292 = vunpack.c.l.b16 %v54
    %v293 = vunpack.c.h.b16 %v54
    %v294 = vunpack.c.l.b16 %v55
    %v295 = vunpack.c.h.b16 %v55
    %v296 = vunpack.c.l.b16 %v56
    %v297 = vunpack.c.h.b16 %v56
    %v298 = vunpack.c.l.b16 %v57
    %v299 = vunpack.c.h.b16 %v57
    %v300 = vunpack.c.l.b16 %v58
    %v301 = vunpack.c.h.b16 %v58
    %v302 = vunpack.c.l.b16 %v59
    %v303 = vunpack.c.h.b16 %v59
    %v304 = vunpack.c.l.b16 %v60
    %v305 = vunpack.c.h.b16 %v60
    %v306 = vunpack.c.l.b16 %v61
    %v307 = vunpack.c.h.b16 %v61
    %v308 = vunpack.c.l.b16 %v62
    %v309 = vunpack.c.h.b16 %v62
    %v310 = vunpack.c.l.b16 %v63
    %v311 = vunpack.c.h.b16 %v63
    %v312 = vunpack.c.l.b16 %v64
    %v313 = vunpack.c.h.b16 %v64
    %v314 = vunpack.c.l.b16 %v65
    %v315 = vunpack.c.h.b16 %v65
    %v316 = vunpack.c.l.b16 %v66
    %v317 = vunpack.c.h.b16 %v66
    %v318 = vunpack.c.l.b16 %v67
    %v319 = vunpack.c.h.b16 %v67
    %v320 = vunpack.c.l.b16 %v68
    %v321 = vunpack.c.h.b16 %v68
    %v322 = vunpack.c.l.b16 %v69
    %v323 = vunpack.c.h.b16 %v69
    %v324 = vunpack.c.l.b16 %v70
    %v325 = vunpack.c.h.b16 %v70
    %v326 = vunpack.c.l.b16 %v71
    %v327 = vunpack.c.h.b16 %v71
    %v328 = vunpack.c.l.b16 %v72
    %v329 = vunpack.c.h.b16 %v72
    %v330 = vunpack.c.l.b16 %v73
    %v331 = vunpack.c.h.b16 %v73
    %v332 = vunpack.c.l.b16 %v74
    %v333 = vunpack.c.h.b16 %v74
    %v334 = vunpack.c.l.b16 %v75
    %v335 = vunpack.c.h.b16 %v75
    %v336 = vunpack.c.l.b16 %v76
    %v337 = vunpack.c.h.b16 %v76
    %v338 = vunpack.c.l.b16 %v77
    %v339 = vunpack.c.h.b16 %v77
    %v340 = vunpack.c.l.b16 %v78
    %v341 = vunpack.c.h.b16 %v78
    %v342 = vunpack.c.l.b16 %v79
    %v343 = vunpack.c.h.b16 %v79
    %v344 = vunpack.c.l.b16 %v80
    %v345 = vunpack.c.h.b16 %v80
    %v346 = vunpack.c.l.b16 %v81
    %v347 = vunpack.c.h.b16 %v81
    %v348 = vunpack.c.l.b16 %v82
    %v349 = vunpack.c.h.b16 %v82
    %v350 = vunpack.c.l.b16 %v83
    %v351 = vunpack.c.h.b16 %v83
    %v352 = vunpack.c.l.b16 %v84
    %v353 = vunpack.c.h.b16 %v84
    %v354 = vunpack.c.l.b16 %v85
    %v355 = vunpack.c.h.b16 %v85
    %v356 = vunpack.c.l.b16 %v86
    %v357 = vunpack.c.h.b16 %v86
    %v358 = vunpack.c.l.b16 %v87
    %v359 = vunpack.c.h.b16 %v87
    %v360 = vunpack.c.l.b16 %v88
    %v361 = vunpack.c.h.b16 %v88
    %v362 = vunpack.c.l.b16 %v89
    %v363 = vunpack.c.h.b16 %v89
    %v364 = vunpack.c.l.b16 %v90
    %v365 = vunpack.c.h.b16 %v90
    %v366 = vunpack.c.l.b16 %v91
    %v367 = vunpack.c.h.b16 %v91
    %v368 = vunpack.c.l.b16 %v92
    %v369 = vunpack.c.h.b16 %v92
    %v370 = vunpack.c.l.b16 %v93
    %v371 = vunpack.c.h.b16 %v93
    %v372 = vunpack.c.l.b16 %v94
    %v373 = vunpack.c.h.b16 %v94
    %v374 = vunpack.c.l.b16 %v95
    %v375 = vunpack.c.h.b16 %v95
    %v376 = vunpack.c.l.b16 %v96
    %v377 = vunpack.c.h.b16 %v96
    %v378 = vunpack.c.l.b16 %v97
    %v379 = vunpack.c.h.b16 %v97
    %v380 = vunpack.c.l.b16 %v98
    %v381 = vunpack.c.h.b16 %v98
    %v382 = vunpack.c.l.b16 %v99
    %v383 = vunpack.c.h.b16 %v99
    %v384 = vunpack.c.l.b16 %v100
    %v385 = vunpack.c.h.b16 %v100
    %v386 = vunpack.c.l.b16 %v101
    %v387 = vunpack.c.h.b16 %v101
    %v388 = vunpack.c.l.b16 %v102
    %v389 = vunpack.c.h.b16 %v102
    %v390 = vunpack.c.l.b16 %v103
    %v391 = vunpack.c.h.b16 %v103
    %v392 = vunpack.c.l.b16 %v104
    %v393 = vunpack.c.h.b16 %v104
    %v394 = vunpack.c.l.b16 %v105
    %v395 = vunpack.c.h.b16 %v105
    %v396 = vunpack.c.l.b16 %v106
    %v397 = vunpack.c.h.b16 %v106
    %v398 = vunpack.c.l.b16 %v107
    %v399 = vunpack.c.h.b16 %v107
    %v400 = vunpack.c.l.b16 %v108
    %v401 = vunpack.c.h.b16 %v108
    %v402 = vunpack.c.l.b16 %v109
    %v403 = vunpack.c.h.b16 %v109
    %v404 = vunpack.c.l.b16 %v110
    %v405 = vunpack.c.h.b16 %v110
    %v406 = vunpack.c.l.b16 %v111
    %v407 = vunpack.c.h.b16 %v111
    %v408 = vunpack.c.l.b16 %v112
    %v409 = vunpack.c.h.b16 %v112
    %v410 = vunpack.c.l.b16 %v113
    %v411 = vunpack.c.h.b16 %v113
    %v412 = vunpack.c.l.b16 %v114
    %v413 = vunpack.c.h.b16 %v114
    %v414 = vunpack.c.l.b16 %v115
    %v415 = vunpack.c.h.b16 %v115
    %v416 = vunpack.c.l.b16 %v116
    %v417 = vunpack.c.h.b16 %v116
    %v418 = vunpack.c.l.b16 %v117
    %v419 = vunpack.c.h.b16 %v117
    %v420 = vunpack.c.l.b16 %v118
    %v421 = vunpack.c.h.b16 %v118
    %v422 = vunpack.c.l.b16 %v119
    %v423 = vunpack.c.h.b16 %v119
    %v424 = vunpack.c.l.b16 %v120
    %v425 = vunpack.c.h.b16 %v120
    %v426 = vunpack.c.l.b16 %v121
    %v427 = vunpack.c.h.b16 %v121
    %v428 = vunpack.c.l.b16 %v122
    %v429 = vunpack.c.h.b16 %v122
    %v430 = vunpack.c.l.b16 %v123
    %v431 = vunpack.c.h.b16 %v123
    %v432 = vunpack.c.l.b16 %v124
    %v433 = vunpack.c.h.b16 %v124
    %v434 = vunpack.c.l.b16 %v125
    %v435 = vunpack.c.h.b16 %v125
    %v436 = vunpack.c.l.b16 %v126
    %v437 = vunpack.c.h.b16 %v126
    %v438 = vunpack.c.l.b16 %v127
    %v439 = vunpack.c.h.b16 %v127
    %v440 = vunpack.c.l.b16 %v128
    %v441 = vunpack.c.h.b16 %v128
    %v442 = vunpack.c.l.b16 %v129
    %v443 = vunpack.c.h.b16 %v129
    %v444 = vunpack.c.l.b16 %v130
    %v445 = vunpack.c.h.b16 %v130
    %v446 = vunpack.c.l.b16 %v131
    %v447 = vunpack.c.h.b16 %v131
    %v448 = vunpack.c.l.b16 %v132
    %v449 = vunpack.c.h.b16 %v132
    %v450 = vunpack.c.l.b16 %v133
    %v451 = vunpack.c.h.b16 %v133
    %v452 = vunpack.c.l.b16 %v134
    %v453 = vunpack.c.h.b16 %v134
    %v454 = vunpack.c.l.b16 %v135
    %v455 = vunpack.c.h.b16 %v135
    %v456 = vunpack.c.l.b16 %v136
    %v457 = vunpack.c.h.b16 %v136
    %v458 = vunpack.c.l.b16 %v137
    %v459 = vunpack.c.h.b16 %v137
    %v460 = vunpack.c.l.b16 %v138
    %v461 = vunpack.c.h.b16 %v138
    %v462 = vunpack.c.l.b16 %v139
    %v463 = vunpack.c.h.b16 %v139
    %v464 = vpack.c.b16 %v270, %v268
    %v465 = vpack.c.b16 %v271, %v269
    %v466 = vpack.c.b16 %v274, %v272
    %v467 = vpack.c.b16 %v275, %v273
    %v468 = vpack.c.b16 %v278, %v276
    %v469 = vpack.c.b16 %v279, %v277
    %v470 = vpack.c.b16 %v282, %v280
    %v471 = vpack.c.b16 %v283, %v281
    %v472 = vpack.c.b16 %v286, %v284
    %v473 = vpack.c.b16 %v287, %v285
    %v474 = vpack.c.b16 %v290, %v288
    %v475 = vpack.c.b16 %v291, %v289
    %v476 = vpack.c.b16 %v294, %v292
    %v477 = vpack.c.b16 %v295, %v293
    %v478 = vpack.c.b16 %v298, %v296
    %v479 = vpack.c.b16 %v299, %v297
    %v480 = vpack.c.b16 %v302, %v300
    %v481 = vpack.c.b16 %v303, %v301
    %v482 = vpack.c.b16 %v306, %v304
    %v483 = vpack.c.b16 %v307, %v305
    %v484 = vpack.c.b16 %v310, %v308
    %v485 = vpack.c.b16 %v311, %v309
    %v486 = vpack.c.b16 %v314, %v312
    %v487 = vpack.c.b16 %v315, %v313
    %v488 = vpack.c.b16 %v318, %v316
    %v489 = vpack.c.b16 %v319, %v317
    %v490 = vpack.c.b16 %v322, %v320
    %v491 = vpack.c.b16 %v323, %v321
    %v492 = vpack.c.b16 %v326, %v324
    %v493 = vpack.c.b16 %v327, %v325
    %v494 = vpack.c.b16 %v330, %v328
    %v495 = vpack.c.b16 %v331, %v329
    %v496 = vpack.c.b16 %v334, %v332
    %v497 = vpack.c.b16 %v335, %v333
    %v498 = vpack.c.b16 %v338, %v336
    %v499 = vpack.c.b16 %v339, %v337
    %v500 = vpack.c.b16 %v342, %v340
    %v501 = vpack.c.b16 %v343, %v341
    %v502 = vpack.c.b16 %v346, %v344
    %v503 = vpack.c.b16 %v347, %v345
    %v504 = vpack.c.b16 %v350, %v348
    %v505 = vpack.c.b16 %v351, %v349
    %v506 = vpack.c.b16 %v354, %v352
    %v507 = vpack.c.b16 %v355, %v353
    %v508 = vpack.c.b16 %v358, %v356
    %v509 = vpack.c.b16 %v359, %v357
    %v510 = vpack.c.b16 %v362, %v360
    %v511 = vpack.c.b16 %v363, %v361
    %v512 = vpack.c.b16 %v366, %v364
    %v513 = vpack.c.b16 %v367, %v365
    %v514 = vpack.c.b16 %v370, %v368
    %v515 = vpack.c.b16 %v371, %v369
    %v516 = vpack.c.b16 %v374, %v372
    %v517 = vpack.c.b16 %v375, %v373
    %v518 = vpack.c.b16 %v378, %v376
    %v519 = vpack.c.b16 %v379, %v377
    %v520 = vpack.c.b16 %v382, %v380
    %v521 = vpack.c.b16 %v383, %v381
    %v522 = vpack.c.b16 %v386, %v384
    %v523 = vpack.c.b16 %v387, %v385
    %v524 = vpack.c.b16 %v390, %v388
    %v525 = vpack.c.b16 %v391, %v389
    %v526 = vpack.c.b16 %v394, %v392
    %v527 = vpack.c.b16 %v395, %v393
    %v528 = vpack.c.b16 %v398, %v396
    %v529 = vpack.c.b16 %v399, %v397
    %v530 = vpack.c.b16 %v402, %v400
    %v531 = vpack.c.b16 %v403, %v401
    %v532 = vpack.c.b16 %v406, %v404
    %v533 = vpack.c.b16 %v407, %v405
    %v534 = vpack.c.b16 %v410, %v408
    %v535 = vpack.c.b16 %v411, %v409
    %v536 = vpack.c.b16 %v414, %v412
    %v537 = vpack.c.b16 %v415, %v413
    %v538 = vpack.c.b16 %v418, %v416
    %v539 = vpack.c.b16 %v419, %v417
    %v540 = vpack.c.b16 %v422, %v420
    %v541 = vpack.c.b16 %v423, %v421
    %v542 = vpack.c.b16 %v426, %v424
    %v543 = vpack.c.b16 %v427, %v425
    %v544 = vpack.c.b16 %v430, %v428
    %v545 = vpack.c.b16 %v431, %v429
    %v546 = vpack.c.b16 %v434, %v432
    %v547 = vpack.c.b16 %v435, %v433
    %v548 = vpack.c.b16 %v438, %v436
    %v549 = vpack.c.b16 %v439, %v437
    %v550 = vpack.c.b16 %v442, %v440
    %v551 = vpack.c.b16 %v443, %v441
    %v552 = vpack.c.b16 %v446, %v444
    %v553 = vpack.c.b16 %v447, %v445
    %v554 = vpack.c.b16 %v450, %v448
    %v555 = vpack.c.b16 %v451, %v449
    %v556 = vpack.c.b16 %v454, %v452
    %v557 = vpack.c.b16 %v455, %v453
    %v558 = vpack.c.b16 %v458, %v456
    %v559 = vpack.c.b16 %v459, %v457
    %v560 = vpack.c.b16 %v462, %v460
    %v561 = vpack.c.b16 %v463, %v461
    %vm660 = vcmask 130048
    %v662 = vsel %vm660, %v163, 0
    %664 = vmatpush.bf16.msra.mxu0 %v478
    %665 = vmatpush.bf16.msra.mxu0 %v476
    %666 = vmatpush.bf16.msra.mxu0 %v474
    %667 = vmatpush.bf16.msra.mxu0 %v472
    %668 = vmatpush.bf16.msra.mxu0 %v470
    %669 = vmatpush.bf16.msra.mxu0 %v468
    %670 = vmatpush.bf16.msra.mxu0 %v466
    %671 = vmatpush.bf16.msra.mxu0 %v464
    %672 = vmatmul.bf16.gmra.mxu0 %v157
    %v673 = vpop.f32.mrf.mxu0
    %v674 = vadd.f32 %v142, %v673
    %v675 = vpop.f32.mrf.mxu0
    %676 = vdwg.mxu0
    %677 = vmatpush.bf16.msra.mxu0 %v494
    %678 = vmatpush.bf16.msra.mxu0 %v492
    %679 = vmatpush.bf16.msra.mxu0 %v490
    %680 = vmatpush.bf16.msra.mxu0 %v488
    %681 = vmatpush.bf16.msra.mxu0 %v486
    %682 = vmatpush.bf16.msra.mxu0 %v484
    %683 = vmatpush.bf16.msra.mxu0 %v482
    %684 = vmatpush.bf16.msra.mxu0 %v480
    %685 = vmatmul.bf16.gmra.mxu0 %v158
    %v686 = vpop.f32.mrf.mxu0
    %v687 = vadd.f32 %v674, %v686
    %v688 = vpop.f32.mrf.mxu0
    %689 = vdwg.mxu0
    %690 = vmatpush.bf16.msra.mxu0 %v510
    %691 = vmatpush.bf16.msra.mxu0 %v508
    %692 = vmatpush.bf16.msra.mxu0 %v506
    %693 = vmatpush.bf16.msra.mxu0 %v504
    %694 = vmatpush.bf16.msra.mxu0 %v502
    %695 = vmatpush.bf16.msra.mxu0 %v500
    %696 = vmatpush.bf16.msra.mxu0 %v498
    %697 = vmatpush.bf16.msra.mxu0 %v496
    %698 = vmatmul.bf16.gmra.mxu0 %v159
    %v699 = vpop.f32.mrf.mxu0
    %v700 = vadd.f32 %v687, %v699
    %v701 = vpop.f32.mrf.mxu0
    %702 = vdwg.mxu0
    %703 = vmatpush.bf16.msra.mxu0 %v526
    %704 = vmatpush.bf16.msra.mxu0 %v524
    %705 = vmatpush.bf16.msra.mxu0 %v522
    %706 = vmatpush.bf16.msra.mxu0 %v520
    %707 = vmatpush.bf16.msra.mxu0 %v518
    %708 = vmatpush.bf16.msra.mxu0 %v516
    %709 = vmatpush.bf16.msra.mxu0 %v514
    %710 = vmatpush.bf16.msra.mxu0 %v512
    %711 = vmatmul.bf16.gmra.mxu0 %v160
    %v712 = vpop.f32.mrf.mxu0
    %v713 = vadd.f32 %v700, %v712
    %v714 = vpop.f32.mrf.mxu0
    %715 = vdwg.mxu0
    %716 = vmatpush.bf16.msra.mxu0 %v542
    %717 = vmatpush.bf16.msra.mxu0 %v540
    %718 = vmatpush.bf16.msra.mxu0 %v538
    %719 = vmatpush.bf16.msra.mxu0 %v536
    %720 = vmatpush.bf16.msra.mxu0 %v534
    %721 = vmatpush.bf16.msra.mxu0 %v532
    %722 = vmatpush.bf16.msra.mxu0 %v530
    %723 = vmatpush.bf16.msra.mxu0 %v528
    %724 = vmatmul.bf16.gmra.mxu0 %v161
    %v725 = vpop.f32.mrf.mxu0
    %v726 = vadd.f32 %v713, %v725
    %v727 = vpop.f32.mrf.mxu0
    %728 = vdwg.mxu0
    %729 = vmatpush.bf16.msra.mxu0 %v558
    %730 = vmatpush.bf16.msra.mxu0 %v556
    %731 = vmatpush.bf16.msra.mxu0 %v554
    %732 = vmatpush.bf16.msra.mxu0 %v552
    %733 = vmatpush.bf16.msra.mxu0 %v550
    %734 = vmatpush.bf16.msra.mxu0 %v548
    %735 = vmatpush.bf16.msra.mxu0 %v546
    %736 = vmatpush.bf16.msra.mxu0 %v544
    %737 = vmatmul.bf16.gmra.mxu0 %v162
    %v738 = vpop.f32.mrf.mxu0
    %v739 = vadd.f32 %v726, %v738
    %v740 = vpop.f32.mrf.mxu0
    %741 = vdwg.mxu0
    %742 = vmatpush.bf16.msra.mxu0 0
    %743 = vmatpush.bf16.msra.mxu0 0
    %744 = vmatpush.bf16.msra.mxu0 0
    %745 = vmatpush.bf16.msra.mxu0 0
    %746 = vmatpush.bf16.msra.mxu0 0
    %747 = vmatpush.bf16.msra.mxu0 0
    %748 = vmatpush.bf16.msra.mxu0 0
    %749 = vmatpush.bf16.msra.mxu0 %v560
    %750 = vmatmul.bf16.gmra.mxu0 %v662
    %v751 = vpop.f32.mrf.mxu0
    %v752 = vadd.f32 %v739, %v751
    %v753 = vpop.f32.mrf.mxu0
    %754 = vdwg.mxu0
    %755 = vmatpush.bf16.msra.mxu0 %v479
    %756 = vmatpush.bf16.msra.mxu0 %v477
    %757 = vmatpush.bf16.msra.mxu0 %v475
    %758 = vmatpush.bf16.msra.mxu0 %v473
    %759 = vmatpush.bf16.msra.mxu0 %v471
    %760 = vmatpush.bf16.msra.mxu0 %v469
    %761 = vmatpush.bf16.msra.mxu0 %v467
    %762 = vmatpush.bf16.msra.mxu0 %v465
    %763 = vmatmul.bf16.gmra.mxu0 %v157
    %v764 = vpop.f32.mrf.mxu0
    %v765 = vadd.f32 %v143, %v764
    %v766 = vpop.f32.mrf.mxu0
    %767 = vdwg.mxu0
    %768 = vmatpush.bf16.msra.mxu0 %v495
    %769 = vmatpush.bf16.msra.mxu0 %v493
    %770 = vmatpush.bf16.msra.mxu0 %v491
    %771 = vmatpush.bf16.msra.mxu0 %v489
    %772 = vmatpush.bf16.msra.mxu0 %v487
    %773 = vmatpush.bf16.msra.mxu0 %v485
    %774 = vmatpush.bf16.msra.mxu0 %v483
    %775 = vmatpush.bf16.msra.mxu0 %v481
    %776 = vmatmul.bf16.gmra.mxu0 %v158
    %v777 = vpop.f32.mrf.mxu0
    %v778 = vadd.f32 %v765, %v777
    %v779 = vpop.f32.mrf.mxu0
    %780 = vdwg.mxu0
    %781 = vmatpush.bf16.msra.mxu0 %v511
    %782 = vmatpush.bf16.msra.mxu0 %v509
    %783 = vmatpush.bf16.msra.mxu0 %v507
    %784 = vmatpush.bf16.msra.mxu0 %v505
    %785 = vmatpush.bf16.msra.mxu0 %v503
    %786 = vmatpush.bf16.msra.mxu0 %v501
    %787 = vmatpush.bf16.msra.mxu0 %v499
    %788 = vmatpush.bf16.msra.mxu0 %v497
    %789 = vmatmul.bf16.gmra.mxu0 %v159
    %v790 = vpop.f32.mrf.mxu0
    %v791 = vadd.f32 %v778, %v790
    %v792 = vpop.f32.mrf.mxu0
    %793 = vdwg.mxu0
    %794 = vmatpush.bf16.msra.mxu0 %v527
    %795 = vmatpush.bf16.msra.mxu0 %v525
    %796 = vmatpush.bf16.msra.mxu0 %v523
    %797 = vmatpush.bf16.msra.mxu0 %v521
    %798 = vmatpush.bf16.msra.mxu0 %v519
    %799 = vmatpush.bf16.msra.mxu0 %v517
    %800 = vmatpush.bf16.msra.mxu0 %v515
    %801 = vmatpush.bf16.msra.mxu0 %v513
    %802 = vmatmul.bf16.gmra.mxu0 %v160
    %v803 = vpop.f32.mrf.mxu0
    %v804 = vadd.f32 %v791, %v803
    %v805 = vpop.f32.mrf.mxu0
    %806 = vdwg.mxu0
    %807 = vmatpush.bf16.msra.mxu0 %v543
    %808 = vmatpush.bf16.msra.mxu0 %v541
    %809 = vmatpush.bf16.msra.mxu0 %v539
    %810 = vmatpush.bf16.msra.mxu0 %v537
    %811 = vmatpush.bf16.msra.mxu0 %v535
    %812 = vmatpush.bf16.msra.mxu0 %v533
    %813 = vmatpush.bf16.msra.mxu0 %v531
    %814 = vmatpush.bf16.msra.mxu0 %v529
    %815 = vmatmul.bf16.gmra.mxu0 %v161
    %v816 = vpop.f32.mrf.mxu0
    %v817 = vadd.f32 %v804, %v816
    %v818 = vpop.f32.mrf.mxu0
    %819 = vdwg.mxu0
    %820 = vmatpush.bf16.msra.mxu0 %v559
    %821 = vmatpush.bf16.msra.mxu0 %v557
    %822 = vmatpush.bf16.msra.mxu0 %v555
    %823 = vmatpush.bf16.msra.mxu0 %v553
    %824 = vmatpush.bf16.msra.mxu0 %v551
    %825 = vmatpush.bf16.msra.mxu0 %v549
    %826 = vmatpush.bf16.msra.mxu0 %v547
    %827 = vmatpush.bf16.msra.mxu0 %v545
    %828 = vmatmul.bf16.gmra.mxu0 %v162
    %v829 = vpop.f32.mrf.mxu0
    %v830 = vadd.f32 %v817, %v829
    %v831 = vpop.f32.mrf.mxu0
    %832 = vdwg.mxu0
    %833 = vmatpush.bf16.msra.mxu0 0
    %834 = vmatpush.bf16.msra.mxu0 0
    %835 = vmatpush.bf16.msra.mxu0 0
    %836 = vmatpush.bf16.msra.mxu0 0
    %837 = vmatpush.bf16.msra.mxu0 0
    %838 = vmatpush.bf16.msra.mxu0 0
    %839 = vmatpush.bf16.msra.mxu0 0
    %840 = vmatpush.bf16.msra.mxu0 %v561
    %841 = vmatmul.bf16.gmra.mxu0 %v662
    %v842 = vpop.f32.mrf.mxu0
    %v843 = vadd.f32 %v830, %v842
    %v844 = vpop.f32.mrf.mxu0
    %845 = vdwg.mxu0
    %v846 = vmul.f32 %v752, 0.5
    %v847 = vmul.f32 %v843, 0.5
    %v848 = vtanh.pop %v846
    %v849 = vtanh.pop %v847
    %v850 = vadd.f32 %v848, 1.0
    %v851 = vadd.f32 %v849, 1.0
    %v852 = vmul.f32 %v850, 0.5
    %v853 = vmul.f32 %v851, 0.5
    %v854 = vpack.c.bf16 %v852, %v852
    %v855 = vpack.c.bf16 %v853, %v853
    %v856 = vld [vmem:[%s3] sm:$0xf]
    %v857 = vld [vmem:[%s3 + $0x4] sm:$0xf]
    %v858 = vld [vmem:[%s3 + $0x8] sm:$0xf]
    %v859 = vld [vmem:[%s3 + $0xc] sm:$0xf]
    %v860 = vld [vmem:[%s3 + $0x10] sm:$0xf]
    %v861 = vld [vmem:[%s3 + $0x14] sm:$0xf]
    %v862 = vld [vmem:[%s3 + $0x18] sm:$0xf]
    %v863 = vld [vmem:[%s3 + $0x1c] sm:$0xf]
    %v864 = vld [vmem:[%s3 + $0x20] sm:$0xf]
    %v865 = vld [vmem:[%s3 + $0x24] sm:$0xf]
    %v866 = vld [vmem:[%s3 + $0x28] sm:$0xf]
    %v867 = vld [vmem:[%s3 + $0x2c] sm:$0xf]
    %v868 = vld [vmem:[%s3 + $0x30] sm:$0xf]
    %v869 = vld [vmem:[%s3 + $0x34] sm:$0xf]
    %v870 = vld [vmem:[%s3 + $0x38] sm:$0xf]
    %v871 = vld [vmem:[%s3 + $0x3c] sm:$0xf]
    %v872 = vld [vmem:[%s3 + $0x40] sm:$0xf]
    %v873 = vld [vmem:[%s3 + $0x44] sm:$0xf]
    %v874 = vld [vmem:[%s3 + $0x48] sm:$0xf]
    %v875 = vld [vmem:[%s3 + $0x4c] sm:$0xf]
    %v876 = vld [vmem:[%s3 + $0x50] sm:$0xf]
    %v877 = vld [vmem:[%s3 + $0x54] sm:$0xf]
    %v878 = vld [vmem:[%s3 + $0x58] sm:$0xf]
    %v879 = vld [vmem:[%s3 + $0x5c] sm:$0xf]
    %v880 = vld [vmem:[%s3 + $0x60] sm:$0xf]
    %v881 = vld [vmem:[%s3 + $0x64] sm:$0xf]
    %v882 = vld [vmem:[%s3 + $0x68] sm:$0xf]
    %v883 = vld [vmem:[%s3 + $0x6c] sm:$0xf]
    %v884 = vld [vmem:[%s3 + $0x70] sm:$0xf]
    %v885 = vld [vmem:[%s3 + $0x74] sm:$0xf]
    %v886 = vld [vmem:[%s3 + $0x78] sm:$0xf]
    %v887 = vld [vmem:[%s3 + $0x7c] sm:$0xf]
    %v888 = vld [vmem:[%s4] sm:$0x1]
    %v890 = vperm.slane %v888, 0
    %v924 = vunpack.c.l.b16 %v856
    %v925 = vunpack.c.l.b16 %v857
    %v926 = vunpack.c.l.b16 %v858
    %v927 = vunpack.c.l.b16 %v859
    %v928 = vunpack.c.l.b16 %v860
    %v929 = vunpack.c.l.b16 %v861
    %v930 = vunpack.c.l.b16 %v862
    %v931 = vunpack.c.l.b16 %v863
    %v932 = vunpack.c.l.b16 %v864
    %v933 = vunpack.c.l.b16 %v865
    %v934 = vunpack.c.l.b16 %v866
    %v935 = vunpack.c.l.b16 %v867
    %v936 = vunpack.c.l.b16 %v868
    %v937 = vunpack.c.l.b16 %v869
    %v938 = vunpack.c.l.b16 %v870
    %v939 = vunpack.c.l.b16 %v871
    %v940 = vunpack.c.l.b16 %v872
    %v941 = vunpack.c.l.b16 %v873
    %v942 = vunpack.c.l.b16 %v874
    %v943 = vunpack.c.l.b16 %v875
    %v944 = vunpack.c.l.b16 %v876
    %v945 = vunpack.c.l.b16 %v877
    %v946 = vunpack.c.l.b16 %v878
    %v947 = vunpack.c.l.b16 %v879
    %v948 = vunpack.c.l.b16 %v880
    %v949 = vunpack.c.l.b16 %v881
    %v950 = vunpack.c.l.b16 %v882
    %v951 = vunpack.c.l.b16 %v883
    %v952 = vunpack.c.l.b16 %v884
    %v953 = vunpack.c.l.b16 %v885
    %v954 = vunpack.c.l.b16 %v886
    %v955 = vunpack.c.l.b16 %v887
    %v956 = vpack.c.b16 %v925, %v924
    %v957 = vpack.c.b16 %v927, %v926
    %v958 = vpack.c.b16 %v929, %v928
    %v959 = vpack.c.b16 %v931, %v930
    %v960 = vpack.c.b16 %v933, %v932
    %v961 = vpack.c.b16 %v935, %v934
    %v962 = vpack.c.b16 %v937, %v936
    %v963 = vpack.c.b16 %v939, %v938
    %v964 = vpack.c.b16 %v941, %v940
    %v965 = vpack.c.b16 %v943, %v942
    %v966 = vpack.c.b16 %v945, %v944
    %v967 = vpack.c.b16 %v947, %v946
    %v968 = vpack.c.b16 %v949, %v948
    %v969 = vpack.c.b16 %v951, %v950
    %v970 = vpack.c.b16 %v953, %v952
    %v971 = vpack.c.b16 %v955, %v954
    %988 = vmatpush.bf16.msra.mxu0 %v963
    %989 = vmatpush.bf16.msra.mxu0 %v962
    %990 = vmatpush.bf16.msra.mxu0 %v961
    %991 = vmatpush.bf16.msra.mxu0 %v960
    %992 = vmatpush.bf16.msra.mxu0 %v959
    %993 = vmatpush.bf16.msra.mxu0 %v958
    %994 = vmatpush.bf16.msra.mxu0 %v957
    %995 = vmatpush.bf16.msra.mxu0 %v956
    %996 = vmatmul.bf16.gmra.mxu0 %v854
    %v997 = vpop.f32.mrf.mxu0
    %v998 = vadd.f32 %v890, %v997
    %v999 = vpop.f32.mrf.mxu0
    %1000 = vdwg.mxu0
    %1001 = vmatpush.bf16.msra.mxu0 %v971
    %1002 = vmatpush.bf16.msra.mxu0 %v970
    %1003 = vmatpush.bf16.msra.mxu0 %v969
    %1004 = vmatpush.bf16.msra.mxu0 %v968
    %1005 = vmatpush.bf16.msra.mxu0 %v967
    %1006 = vmatpush.bf16.msra.mxu0 %v966
    %1007 = vmatpush.bf16.msra.mxu0 %v965
    %1008 = vmatpush.bf16.msra.mxu0 %v964
    %1009 = vmatmul.bf16.gmra.mxu0 %v855
    %v1010 = vpop.f32.mrf.mxu0
    %v1011 = vadd.f32 %v998, %v1010
    %v1012 = vpop.f32.mrf.mxu0
    %1013 = vdwg.mxu0
    %vm1014 = vcmask 80896
    %v1015 = vsel %vm1014, %v1011, -inf
    %1016 = vmax.xlane.f32.xlu0 %v1015
    %v1017 = vpop.xlane.xlu0 %1016
    %v1018 = vsub.f32 %v1011, %v1017
    %v1019 = vmul.f32 %v1018, 1.442695
    %v1020 = vpow.pop %v1019
    %v1021 = vsel %vm1014, %v1020, 0.0
    %1022 = vadd.xlane.f32.xlu0 %v1021
    %v1023 = vpop.xlane.xlu0 %1022
    %v1024 = vrcp.pop %v1023
    %v1025 = vmul.f32 %v1023, %v1024
    %v1026 = vsub.f32 1.0, %v1025
    %v1027 = vmul.f32 %v1024, %v1026
    %v1028 = vadd.f32 %v1024, %v1027
    %vm1029 = vweird.f32 %v1023
    %vm1030 = vweird.f32 %v1024
    %vm1031 = vmor %vm1029, %vm1030
    %v1032 = vsel %vm1031, %v1024, %v1028
    %v1033 = vand.u32 2147483647, %v1023
    %vm1034 = vcmp.eq.f32.partialorder %v1033, 8.507059e+37
    %v1035 = vand.u32 %v1023, 2147483648
    %v1036 = vor.u32 1.1754944e-38, %v1035
    %v1037 = vsel %vm1034, %v1036, %v1032
    %v1038 = vmul.f32 %v1020, %v1037
    %1039 = vst.msk [vmem:[#allocation5] sm:$0xff] %vm1014, %v1038
    // Predicated region
    $region26: #{network_forward.1} parent=1 // pred_check
      _
    $region27: #{network_forward.1} parent=1 // pred_check_branch
      %1041 = sbr.rel (0) target = $region29
    $region28: #{network_forward.1} parent=1 // pred_region
      %1043 = vsyncadd [#allocation4], 0
      %s1045 = sshll.u32 [#allocation5], 4
      %s1046 = int_to_ptr.vmem [resolvable:$true] %s1045
      %s1047 = sshll.u32 %s5, 4
      %s1048 = int_to_ptr.hbm [resolvable:$true] %s1047
      %1050 = dma.vmem_to_hbm [thread:$0]  %s1046, 128, %s1048, [#allocation4]
    $region29: #{network_forward.1} parent=1 // pred_fallthru
      _
    // Predicated region
    $region30: #{network_forward.1} parent=1 // pred_check
      _
    $region31: #{network_forward.1} parent=1 // pred_check_branch
      %1052 = sbr.rel (0) target = $region33
    $region32: #{network_forward.1} parent=1 // pred_region
      %1054 = dma.done [#allocation4], 128
    $region33: #{network_forward.1} parent=1 // pred_fallthru
      _
    %1055 = vsyncpa [#allocation3], 1
    %1056 = vsyncpa [#allocation4], 1

</llo_original>
